<compile_context>
chip_gen: v5e
topology: v5e:2x2
jax: 0.10.0
libtpu: 0.0.40
codegen_flags: <defaults>
</compile_context>

<pallas_src>
import functools
import math

import jax
import jax.numpy as jnp
from jax.experimental import pallas as pl
from jax.experimental.pallas import tpu as pltpu


def _mha_attn_kernel(q_ref, k_ref, wq_ref, bq_ref, wk_ref, bk_ref, o_ref, *,
                     scale, dk, block_h, kv_valid, use_bf16, approx_recip):
    """One (batch tile, query tile, head group) grid step.

    q_ref : (bB, tq, D)           query activation tile
    k_ref : (bB, Sk, D)           full (padded) key activations for this batch tile
    wq_ref/wk_ref : (1, D, gw)    this head group's projection weights (gw = block_h*dk)
    bq_ref/bk_ref : (1, 1, gw)    this head group's projection bias
    o_ref : (bB, block_h, tq, Sk) attention-probability output block
    """
    bB, tq, D = q_ref.shape
    Sk = k_ref.shape[1]
    gw = block_h * dk

    q = q_ref[...].reshape(bB * tq, D)
    k = k_ref[...].reshape(bB * Sk, D)
    wq = wq_ref[0]                      # (D, gw)
    wk = wk_ref[0]
    bq = bq_ref[0]                      # (1, gw)
    bk = bk_ref[0]

    if use_bf16:
        # v6e/v7x MXU is bf16-native; accumulate in f32.
        q, k = q.astype(jnp.bfloat16), k.astype(jnp.bfloat16)
        wq, wk = wq.astype(jnp.bfloat16), wk.astype(jnp.bfloat16)

    # Dense, lane-wide projection of the whole head group (one MXU pass per
    # operand); bias added in f32; 1/sqrt(dk) folded into Q once.
    Q = (jnp.dot(q, wq, preferred_element_type=jnp.float32) + bq) * scale
    K = jnp.dot(k, wk, preferred_element_type=jnp.float32) + bk

    if use_bf16:
        Q = Q.astype(jnp.bfloat16)
        K = K.astype(jnp.bfloat16)
    Q = Q.reshape(bB, tq, gw)
    K = K.reshape(bB, Sk, gw)

    # Additive mask for host-padded key columns (hoisted out of the head loop).
    if kv_valid < Sk:
        col = jax.lax.broadcasted_iota(jnp.int32, (1, 1, Sk), 2)
        neg = jnp.where(col < kv_valid, 0.0, -1e9).astype(jnp.float32)
    else:
        neg = None

    for hd in range(block_h):
        qh = Q[:, :, hd * dk:(hd + 1) * dk]
        kh = K[:, :, hd * dk:(hd + 1) * dk]
        # Scores: contract the trailing dk of both operands (no kh.T, so no
        # XLU transpose / layout copy per head).
        s = jax.lax.dot_general(
            qh, kh,
            dimension_numbers=(((2,), (2,)), ((0,), (0,))),
            preferred_element_type=jnp.float32)          # (bB, tq, Sk)
        if neg is not None:
            s = s + neg
        # Numerically-stable softmax over the key axis (f32 VPU math).
        s = s - jnp.max(s, axis=-1, keepdims=True)
        e = jnp.exp(s)
        p = e * pl.reciprocal(jnp.sum(e, axis=-1, keepdims=True),
                              approx=approx_recip)
        o_ref[:, hd:hd + 1, :, :] = p[:, None].astype(o_ref.dtype)


def _vmem_estimate(block_b, tq, sk, D, dk, block_h):
    """Per-grid-step VMEM footprint (bytes): double-buffered pipelined operands
    plus the live f32 intermediates (group projections + softmax temporaries)."""
    gw = block_h * dk
    f = 4
    q_tile = block_b * tq * D * f
    k_tile = block_b * sk * D * f
    w_tile = 2 * (D * gw + gw) * f            # W_q/b_q + W_k/b_k of the group
    o_tile = block_b * block_h * tq * sk * f
    proj = block_b * (tq + sk) * gw * f       # projected Q and K for the group
    smax = 3 * block_b * tq * sk * f          # s, e, p for one head at a time
    return 2 * (q_tile + k_tile + w_tile + o_tile) + proj + smax


def _choose_tiles(B, sq_pad, sk_pad, D, h, dk, budget):
    """Pick (block_b, tq, block_h) under the chip's VMEM budget."""
    def divisors(n):
        return [d for d in range(n, 0, -1) if n % d == 0]

    tq_cands = [t for t in divisors(sq_pad) if t % 8 == 0 and t <= 512] or [sq_pad]
    bb_cands = [d for d in divisors(B) if d <= 8] or [1]
    bh_cands = divisors(h)

    # Tiny problems (like the test harness): one fused grid step — the
    # ~0.35 us per-step overhead would dominate otherwise.
    if _vmem_estimate(B, sq_pad, sk_pad, D, dk, h) <= budget // 4:
        return B, sq_pad, h

    for require_multi_step in (True, False):
        for bh in bh_cands:              # widest head group first (lane-dense proj)
            for tq in tq_cands:          # then large query tiles (<=512)
                for bb in bb_cands:      # then batch tiling
                    steps = (B // bb) * (sq_pad // tq) * (h // bh)
                    if (_vmem_estimate(bb, tq, sk_pad, D, dk, bh) <= budget
                            and (steps >= 2 or not require_multi_step)):
                        return bb, tq, bh
    # Nothing fits the budget; use the smallest tiles and stretch vmem_limit.
    return 1, tq_cands[-1], 1


def multi_head_attention(query, key, w_q, b_q, w_k, b_k, *, h,
                         use_bf16_matmul=False, approx_reciprocal=False,
                         out_dtype=jnp.float32):
    """Pallas equivalent of MultiHeadAttention.forward(query, key, mask=None).

    query : [B, S_q, d_model] float32
    key   : [B, S_k, d_model] float32
    w_q, w_k : [d_model, d_model]  (applied as x @ W, i.e. already transposed
                                    relative to torch.nn.Linear.weight)
    b_q, b_k : [d_model]
    returns  : [B, h, S_q, S_k] attention probabilities (out_dtype)
    """
    B, S_q, D = query.shape
    Bk, S_k, Dk2 = key.shape
    assert Bk == B and Dk2 == D and D % h == 0
    dk = D // h

    # Host-side padding: sublane-align S_q (8), lane-align S_k (128) so the
    # output stores are dense vst instead of masked partial stores.
    sq_pad = -(-S_q // 8) * 8
    sk_pad = -(-S_k // 128) * 128
    if sq_pad != S_q:
        query = jnp.pad(query, ((0, 0), (0, sq_pad - S_q), (0, 0)))
    if sk_pad != S_k:
        key = jnp.pad(key, ((0, 0), (0, sk_pad - S_k), (0, 0)))

    # Chip-aware VMEM budget (~48 MiB on v7x, ~96 MiB on v5e/v6e).
    try:
        vmem_cap = int(pltpu.get_tpu_info().vmem_capacity_bytes)
    except Exception:
        vmem_cap = 64 * 1024 * 1024
    budget = min(int(vmem_cap * 0.75), 96 * 1024 * 1024)

    block_b, tq, block_h = _choose_tiles(B, sq_pad, sk_pad, D, h, dk, budget)
    gw = block_h * dk
    n_hg = h // block_h

    est = _vmem_estimate(block_b, tq, sk_pad, D, dk, block_h)
    vmem_limit = int(min(vmem_cap * 0.9, max(1.3 * est, 16 * 1024 * 1024)))

    # Head-group-major repack of the projection parameters (host side); the
    # columns of a head group are contiguous, so this is a pure reshape+swap.
    wq_g = w_q.reshape(D, n_hg, gw).transpose(1, 0, 2)   # (n_hg, D, gw)
    wk_g = w_k.reshape(D, n_hg, gw).transpose(1, 0, 2)
    bq_g = b_q.reshape(n_hg, 1, gw)
    bk_g = b_k.reshape(n_hg, 1, gw)

    kernel = functools.partial(
        _mha_attn_kernel,
        scale=1.0 / math.sqrt(dk), dk=dk, block_h=block_h, kv_valid=S_k,
        use_bf16=use_bf16_matmul, approx_recip=approx_reciprocal)

    # Head-group axis innermost: q/k block indices don't depend on it, so the
    # activation DMAs are fetched once per (batch tile, query tile).
    grid = (B // block_b, sq_pad // tq, n_hg)

    out = pl.pallas_call(
        kernel,
        out_shape=jax.ShapeDtypeStruct((B, h, sq_pad, sk_pad), out_dtype),
        grid=grid,
        in_specs=[
            pl.BlockSpec((block_b, tq, D), lambda b, q, g: (b, q, 0)),       # query
            pl.BlockSpec((block_b, sk_pad, D), lambda b, q, g: (b, 0, 0)),   # key
            pl.BlockSpec((1, D, gw), lambda b, q, g: (g, 0, 0)),             # W_q[group]
            pl.BlockSpec((1, 1, gw), lambda b, q, g: (g, 0, 0)),             # b_q[group]
            pl.BlockSpec((1, D, gw), lambda b, q, g: (g, 0, 0)),             # W_k[group]
            pl.BlockSpec((1, 1, gw), lambda b, q, g: (g, 0, 0)),             # b_k[group]
        ],
        out_specs=pl.BlockSpec((block_b, block_h, tq, sk_pad),
                               lambda b, q, g: (b, g, q, 0)),
        compiler_params=pltpu.CompilerParams(
            dimension_semantics=("parallel", "parallel", "arbitrary"),
            vmem_limit_bytes=vmem_limit),
    )(query, key, wq_g, bq_g, wk_g, bk_g)

    if sq_pad != S_q or sk_pad != S_k:
        out = out[:, :, :S_q, :S_k]
    return out


def _reference(query, key, w_q, b_q, w_k, b_k, *, h):
    """Pure-JAX reference mirroring the PyTorch forward (eval mode, no mask)."""
    B, S, D = query.shape
    dk = D // h
    Q = (query @ w_q + b_q).reshape(B, S, h, dk).transpose(0, 2, 1, 3)
    K = (key @ w_k + b_k).reshape(B, key.shape[1], h, dk).transpose(0, 2, 1, 3)
    scores = jnp.einsum("bhqd,bhkd->bhqk", Q, K) / math.sqrt(dk)
    return jax.nn.softmax(scores, axis=-1)


if __name__ == "__main__":
    # Small shapes consistent with the module: h=4, d_model=32, batch=2, seq=8.
    h, d_model = 4, 32
    B, S = 2, 8

    key0 = jax.random.PRNGKey(0)
    k_q, k_k, k_wq, k_bq, k_wk, k_bk = jax.random.split(key0, 6)

    query = jax.random.normal(k_q, (B, S, d_model), dtype=jnp.float32)
    key_in = jax.random.normal(k_k, (B, S, d_model), dtype=jnp.float32)

    # Deterministic nn.Linear-style init: U(-1/sqrt(fan_in), 1/sqrt(fan_in)).
    bound = 1.0 / math.sqrt(d_model)
    w_q = jax.random.uniform(k_wq, (d_model, d_model), jnp.float32, -bound, bound)
    b_q = jax.random.uniform(k_bq, (d_model,), jnp.float32, -bound, bound)
    w_k = jax.random.uniform(k_wk, (d_model, d_model), jnp.float32, -bound, bound)
    b_k = jax.random.uniform(k_bk, (d_model,), jnp.float32, -bound, bound)

    attn = multi_head_attention(query, key_in, w_q, b_q, w_k, b_k, h=h)
    attn = jax.block_until_ready(attn)

    ref = _reference(query, key_in, w_q, b_q, w_k, b_k, h=h)
    assert attn.shape == (B, h, S, S)
    assert jnp.allclose(attn, ref, atol=1e-5, rtol=1e-5), "mismatch vs reference"

    print("KERNEL_OK")
</pallas_src>

<mosaic_0001>
module attributes {stable_mosaic.version = 11 : i64} {
  func.func @_mha_attn_kernel(%arg0: i32, %arg1: i32, %arg2: i32, %arg3: memref<2x8x32xf32, #tpu.memory_space<vmem>>, %arg4: memref<2x128x32xf32, #tpu.memory_space<vmem>>, %arg5: memref<1x32x32xf32, #tpu.memory_space<vmem>>, %arg6: memref<1x1x32xf32, #tpu.memory_space<vmem>>, %arg7: memref<1x32x32xf32, #tpu.memory_space<vmem>>, %arg8: memref<1x1x32xf32, #tpu.memory_space<vmem>>, %arg9: memref<2x4x8x128xf32, #tpu.memory_space<vmem>>) attributes {dimension_semantics = [#tpu.dimension_semantics<parallel>, #tpu.dimension_semantics<parallel>, #tpu.dimension_semantics<arbitrary>], iteration_bounds = array<i64: 1, 1, 1>, scalar_prefetch = 0 : i64, scratch_operands = 0 : i64, tpu.core_type = #tpu.core_type<tc>, window_params = [{transform_indices = @transform_0, window_bounds = array<i64: 2, 8, 32>}, {transform_indices = @transform_1, window_bounds = array<i64: 2, 128, 32>}, {transform_indices = @transform_2, window_bounds = array<i64: 1, 32, 32>}, {transform_indices = @transform_3, window_bounds = array<i64: 1, 1, 32>}, {transform_indices = @transform_4, window_bounds = array<i64: 1, 32, 32>}, {transform_indices = @transform_5, window_bounds = array<i64: 1, 1, 32>}, {transform_indices = @transform_6, window_bounds = array<i64: 2, 4, 8, 128>}]} {
    %c0 = arith.constant 0 : index
    %c0_0 = arith.constant 0 : index
    %c0_1 = arith.constant 0 : index
    %0 = vector.load %arg3[%c0, %c0_0, %c0_1] : memref<2x8x32xf32, #tpu.memory_space<vmem>>, vector<2x8x32xf32>
    %1 = vector.shape_cast %0 : vector<2x8x32xf32> to vector<16x32xf32>
    %c0_2 = arith.constant 0 : index
    %c0_3 = arith.constant 0 : index
    %c0_4 = arith.constant 0 : index
    %2 = vector.load %arg4[%c0_2, %c0_3, %c0_4] : memref<2x128x32xf32, #tpu.memory_space<vmem>>, vector<2x128x32xf32>
    %3 = vector.shape_cast %2 : vector<2x128x32xf32> to vector<256x32xf32>
    %c0_5 = arith.constant 0 : index
    %c0_6 = arith.constant 0 : index
    %c0_7 = arith.constant 0 : index
    %4 = vector.load %arg5[%c0_5, %c0_6, %c0_7] : memref<1x32x32xf32, #tpu.memory_space<vmem>>, vector<1x32x32xf32>
    %5 = vector.shape_cast %4 : vector<1x32x32xf32> to vector<32x32xf32>
    %c0_8 = arith.constant 0 : index
    %c0_9 = arith.constant 0 : index
    %c0_10 = arith.constant 0 : index
    %6 = vector.load %arg7[%c0_8, %c0_9, %c0_10] : memref<1x32x32xf32, #tpu.memory_space<vmem>>, vector<1x32x32xf32>
    %7 = vector.shape_cast %6 : vector<1x32x32xf32> to vector<32x32xf32>
    %c0_11 = arith.constant 0 : index
    %c0_12 = arith.constant 0 : index
    %c0_13 = arith.constant 0 : index
    %8 = vector.load %arg6[%c0_11, %c0_12, %c0_13] : memref<1x1x32xf32, #tpu.memory_space<vmem>>, vector<1x1x32xf32>
    %9 = vector.shape_cast %8 : vector<1x1x32xf32> to vector<1x32xf32>
    %c0_14 = arith.constant 0 : index
    %c0_15 = arith.constant 0 : index
    %c0_16 = arith.constant 0 : index
    %10 = vector.load %arg8[%c0_14, %c0_15, %c0_16] : memref<1x1x32xf32, #tpu.memory_space<vmem>>, vector<1x1x32xf32>
    %11 = vector.shape_cast %10 : vector<1x1x32xf32> to vector<1x32xf32>
    %cst = arith.constant dense<0.000000e+00> : vector<16x32xf32>
    %12 = tpu.matmul %1, %5, %cst {dimension_numbers = #tpu.dot_dimension_numbers<[1], [0], [0], [1], [0, 0, 1, 1], [], []>} : vector<16x32xf32>, vector<32x32xf32>, vector<16x32xf32> -> vector<16x32xf32>
    %13 = vector.broadcast %9 : vector<1x32xf32> to vector<16x32xf32>
    %14 = arith.addf %12, %13 : vector<16x32xf32>
    %cst_17 = arith.constant 0.353553385 : f32
    %15 = vector.broadcast %cst_17 : f32 to vector<16x32xf32>
    %16 = arith.mulf %14, %15 : vector<16x32xf32>
    %cst_18 = arith.constant dense<0.000000e+00> : vector<256x32xf32>
    %17 = tpu.matmul %3, %7, %cst_18 {dimension_numbers = #tpu.dot_dimension_numbers<[1], [0], [0], [1], [0, 0, 1, 1], [], []>} : vector<256x32xf32>, vector<32x32xf32>, vector<256x32xf32> -> vector<256x32xf32>
    %18 = vector.broadcast %11 : vector<1x32xf32> to vector<256x32xf32>
    %19 = arith.addf %17, %18 : vector<256x32xf32>
    %20 = vector.shape_cast %16 : vector<16x32xf32> to vector<2x8x32xf32>
    %21 = vector.shape_cast %19 : vector<256x32xf32> to vector<2x128x32xf32>
    %22 = tpu.iota {dimensions = array<i32: 2>} : vector<1x1x128xi32>
    %c8_i32 = arith.constant 8 : i32
    %23 = vector.broadcast %c8_i32 : i32 to vector<1x1x128xi32>
    %24 = arith.cmpi slt, %22, %23 : vector<1x1x128xi32>
    %cst_19 = arith.constant 0.000000e+00 : f32
    %cst_20 = arith.constant -1.000000e+09 : f32
    %25 = vector.broadcast %cst_19 : f32 to vector<1x1x128xf32>
    %26 = vector.broadcast %cst_20 : f32 to vector<1x1x128xf32>
    %27 = arith.select %24, %25, %26 : vector<1x1x128xi1>, vector<1x1x128xf32>
    %28 = vector.extract_strided_slice %20 {offsets = [0, 0, 0], sizes = [2, 8, 8], strides = [1, 1, 1]} : vector<2x8x32xf32> to vector<2x8x8xf32>
    %29 = vector.extract_strided_slice %21 {offsets = [0, 0, 0], sizes = [2, 128, 8], strides = [1, 1, 1]} : vector<2x128x32xf32> to vector<2x128x8xf32>
    %cst_21 = arith.constant dense<0.000000e+00> : vector<2x8x128xf32>
    %30 = tpu.matmul %28, %29, %cst_21 {dimension_numbers = #tpu.dot_dimension_numbers<[2], [2], [1], [1], [0, 0, 0, 1, 1, 1], [0], [0]>} : vector<2x8x8xf32>, vector<2x128x8xf32>, vector<2x8x128xf32> -> vector<2x8x128xf32>
    %31 = vector.broadcast %27 : vector<1x1x128xf32> to vector<2x8x128xf32>
    %32 = arith.addf %30, %31 : vector<2x8x128xf32>
    %cst_22 = arith.constant dense<0xFF800000> : vector<2x8xf32>
    %33 = vector.multi_reduction <maximumf>, %32, %cst_22 [2] : vector<2x8x128xf32> to vector<2x8xf32>
    %34 = vector.shape_cast %33 : vector<2x8xf32> to vector<2x8x1xf32>
    %35 = vector.broadcast %34 : vector<2x8x1xf32> to vector<2x8x128xf32>
    %36 = arith.subf %32, %35 : vector<2x8x128xf32>
    %37 = math.exp %36 : vector<2x8x128xf32>
    %cst_23 = arith.constant dense<0.000000e+00> : vector<2x8xf32>
    %38 = vector.multi_reduction <add>, %37, %cst_23 [2] : vector<2x8x128xf32> to vector<2x8xf32>
    %39 = vector.shape_cast %38 : vector<2x8xf32> to vector<2x8x1xf32>
    %40 = tpu.reciprocal %39 : vector<2x8x1xf32> -> vector<2x8x1xf32>
    %41 = vector.broadcast %40 : vector<2x8x1xf32> to vector<2x8x128xf32>
    %42 = arith.mulf %37, %41 : vector<2x8x128xf32>
    %43 = vector.shape_cast %42 : vector<2x8x128xf32> to vector<2x1x8x128xf32>
    %c0_24 = arith.constant 0 : index
    %c0_25 = arith.constant 0 : index
    %c0_26 = arith.constant 0 : index
    %c0_27 = arith.constant 0 : index
    %44 = vector.load %arg9[%c0_24, %c0_25, %c0_26, %c0_27] : memref<2x4x8x128xf32, #tpu.memory_space<vmem>>, vector<2x1x8x128xf32>
    tpu.vector_store %arg9[%c0_24, %c0_25, %c0_26, %c0_27], %43 {strides = array<i32>} : memref<2x4x8x128xf32, #tpu.memory_space<vmem>>, vector<2x1x8x128xf32>,
    %45 = vector.extract_strided_slice %20 {offsets = [0, 0, 8], sizes = [2, 8, 8], strides = [1, 1, 1]} : vector<2x8x32xf32> to vector<2x8x8xf32>
    %46 = vector.extract_strided_slice %21 {offsets = [0, 0, 8], sizes = [2, 128, 8], strides = [1, 1, 1]} : vector<2x128x32xf32> to vector<2x128x8xf32>
    %cst_28 = arith.constant dense<0.000000e+00> : vector<2x8x128xf32>
    %47 = tpu.matmul %45, %46, %cst_28 {dimension_numbers = #tpu.dot_dimension_numbers<[2], [2], [1], [1], [0, 0, 0, 1, 1, 1], [0], [0]>} : vector<2x8x8xf32>, vector<2x128x8xf32>, vector<2x8x128xf32> -> vector<2x8x128xf32>
    %48 = vector.broadcast %27 : vector<1x1x128xf32> to vector<2x8x128xf32>
    %49 = arith.addf %47, %48 : vector<2x8x128xf32>
    %cst_29 = arith.constant dense<0xFF800000> : vector<2x8xf32>
    %50 = vector.multi_reduction <maximumf>, %49, %cst_29 [2] : vector<2x8x128xf32> to vector<2x8xf32>
    %51 = vector.shape_cast %50 : vector<2x8xf32> to vector<2x8x1xf32>
    %52 = vector.broadcast %51 : vector<2x8x1xf32> to vector<2x8x128xf32>
    %53 = arith.subf %49, %52 : vector<2x8x128xf32>
    %54 = math.exp %53 : vector<2x8x128xf32>
    %cst_30 = arith.constant dense<0.000000e+00> : vector<2x8xf32>
    %55 = vector.multi_reduction <add>, %54, %cst_30 [2] : vector<2x8x128xf32> to vector<2x8xf32>
    %56 = vector.shape_cast %55 : vector<2x8xf32> to vector<2x8x1xf32>
    %57 = tpu.reciprocal %56 : vector<2x8x1xf32> -> vector<2x8x1xf32>
    %58 = vector.broadcast %57 : vector<2x8x1xf32> to vector<2x8x128xf32>
    %59 = arith.mulf %54, %58 : vector<2x8x128xf32>
    %60 = vector.shape_cast %59 : vector<2x8x128xf32> to vector<2x1x8x128xf32>
    %c0_31 = arith.constant 0 : index
    %c1 = arith.constant 1 : index
    %c0_32 = arith.constant 0 : index
    %c0_33 = arith.constant 0 : index
    %61 = vector.load %arg9[%c0_31, %c1, %c0_32, %c0_33] : memref<2x4x8x128xf32, #tpu.memory_space<vmem>>, vector<2x1x8x128xf32>
    tpu.vector_store %arg9[%c0_31, %c1, %c0_32, %c0_33], %60 {strides = array<i32>} : memref<2x4x8x128xf32, #tpu.memory_space<vmem>>, vector<2x1x8x128xf32>,
    %62 = vector.extract_strided_slice %20 {offsets = [0, 0, 16], sizes = [2, 8, 8], strides = [1, 1, 1]} : vector<2x8x32xf32> to vector<2x8x8xf32>
    %63 = vector.extract_strided_slice %21 {offsets = [0, 0, 16], sizes = [2, 128, 8], strides = [1, 1, 1]} : vector<2x128x32xf32> to vector<2x128x8xf32>
    %cst_34 = arith.constant dense<0.000000e+00> : vector<2x8x128xf32>
    %64 = tpu.matmul %62, %63, %cst_34 {dimension_numbers = #tpu.dot_dimension_numbers<[2], [2], [1], [1], [0, 0, 0, 1, 1, 1], [0], [0]>} : vector<2x8x8xf32>, vector<2x128x8xf32>, vector<2x8x128xf32> -> vector<2x8x128xf32>
    %65 = vector.broadcast %27 : vector<1x1x128xf32> to vector<2x8x128xf32>
    %66 = arith.addf %64, %65 : vector<2x8x128xf32>
    %cst_35 = arith.constant dense<0xFF800000> : vector<2x8xf32>
    %67 = vector.multi_reduction <maximumf>, %66, %cst_35 [2] : vector<2x8x128xf32> to vector<2x8xf32>
    %68 = vector.shape_cast %67 : vector<2x8xf32> to vector<2x8x1xf32>
    %69 = vector.broadcast %68 : vector<2x8x1xf32> to vector<2x8x128xf32>
    %70 = arith.subf %66, %69 : vector<2x8x128xf32>
    %71 = math.exp %70 : vector<2x8x128xf32>
    %cst_36 = arith.constant dense<0.000000e+00> : vector<2x8xf32>
    %72 = vector.multi_reduction <add>, %71, %cst_36 [2] : vector<2x8x128xf32> to vector<2x8xf32>
    %73 = vector.shape_cast %72 : vector<2x8xf32> to vector<2x8x1xf32>
    %74 = tpu.reciprocal %73 : vector<2x8x1xf32> -> vector<2x8x1xf32>
    %75 = vector.broadcast %74 : vector<2x8x1xf32> to vector<2x8x128xf32>
    %76 = arith.mulf %71, %75 : vector<2x8x128xf32>
    %77 = vector.shape_cast %76 : vector<2x8x128xf32> to vector<2x1x8x128xf32>
    %c0_37 = arith.constant 0 : index
    %c2 = arith.constant 2 : index
    %c0_38 = arith.constant 0 : index
    %c0_39 = arith.constant 0 : index
    %78 = vector.load %arg9[%c0_37, %c2, %c0_38, %c0_39] : memref<2x4x8x128xf32, #tpu.memory_space<vmem>>, vector<2x1x8x128xf32>
    tpu.vector_store %arg9[%c0_37, %c2, %c0_38, %c0_39], %77 {strides = array<i32>} : memref<2x4x8x128xf32, #tpu.memory_space<vmem>>, vector<2x1x8x128xf32>,
    %79 = vector.extract_strided_slice %20 {offsets = [0, 0, 24], sizes = [2, 8, 8], strides = [1, 1, 1]} : vector<2x8x32xf32> to vector<2x8x8xf32>
    %80 = vector.extract_strided_slice %21 {offsets = [0, 0, 24], sizes = [2, 128, 8], strides = [1, 1, 1]} : vector<2x128x32xf32> to vector<2x128x8xf32>
    %cst_40 = arith.constant dense<0.000000e+00> : vector<2x8x128xf32>
    %81 = tpu.matmul %79, %80, %cst_40 {dimension_numbers = #tpu.dot_dimension_numbers<[2], [2], [1], [1], [0, 0, 0, 1, 1, 1], [0], [0]>} : vector<2x8x8xf32>, vector<2x128x8xf32>, vector<2x8x128xf32> -> vector<2x8x128xf32>
    %82 = vector.broadcast %27 : vector<1x1x128xf32> to vector<2x8x128xf32>
    %83 = arith.addf %81, %82 : vector<2x8x128xf32>
    %cst_41 = arith.constant dense<0xFF800000> : vector<2x8xf32>
    %84 = vector.multi_reduction <maximumf>, %83, %cst_41 [2] : vector<2x8x128xf32> to vector<2x8xf32>
    %85 = vector.shape_cast %84 : vector<2x8xf32> to vector<2x8x1xf32>
    %86 = vector.broadcast %85 : vector<2x8x1xf32> to vector<2x8x128xf32>
    %87 = arith.subf %83, %86 : vector<2x8x128xf32>
    %88 = math.exp %87 : vector<2x8x128xf32>
    %cst_42 = arith.constant dense<0.000000e+00> : vector<2x8xf32>
    %89 = vector.multi_reduction <add>, %88, %cst_42 [2] : vector<2x8x128xf32> to vector<2x8xf32>
    %90 = vector.shape_cast %89 : vector<2x8xf32> to vector<2x8x1xf32>
    %91 = tpu.reciprocal %90 : vector<2x8x1xf32> -> vector<2x8x1xf32>
    %92 = vector.broadcast %91 : vector<2x8x1xf32> to vector<2x8x128xf32>
    %93 = arith.mulf %88, %92 : vector<2x8x128xf32>
    %94 = vector.shape_cast %93 : vector<2x8x128xf32> to vector<2x1x8x128xf32>
    %c0_43 = arith.constant 0 : index
    %c3 = arith.constant 3 : index
    %c0_44 = arith.constant 0 : index
    %c0_45 = arith.constant 0 : index
    %95 = vector.load %arg9[%c0_43, %c3, %c0_44, %c0_45] : memref<2x4x8x128xf32, #tpu.memory_space<vmem>>, vector<2x1x8x128xf32>
    tpu.vector_store %arg9[%c0_43, %c3, %c0_44, %c0_45], %94 {strides = array<i32>} : memref<2x4x8x128xf32, #tpu.memory_space<vmem>>, vector<2x1x8x128xf32>,
    return
  }
  func.func @transform_0(%arg0: i32, %arg1: i32, %arg2: i32) -> (i32, i32, i32) {
    %c0_i32 = arith.constant 0 : i32
    %c0_i32_0 = arith.constant 0 : i32
    return %arg0, %arg1, %c0_i32 : i32, i32, i32
  }
  func.func @transform_1(%arg0: i32, %arg1: i32, %arg2: i32) -> (i32, i32, i32) {
    %c0_i32 = arith.constant 0 : i32
    %c0_i32_0 = arith.constant 0 : i32
    %c0_i32_1 = arith.constant 0 : i32
    return %arg0, %c0_i32, %c0_i32_0 : i32, i32, i32
  }
  func.func @transform_2(%arg0: i32, %arg1: i32, %arg2: i32) -> (i32, i32, i32) {
    %c0_i32 = arith.constant 0 : i32
    %c0_i32_0 = arith.constant 0 : i32
    %c0_i32_1 = arith.constant 0 : i32
    return %arg2, %c0_i32, %c0_i32_0 : i32, i32, i32
  }
  func.func @transform_3(%arg0: i32, %arg1: i32, %arg2: i32) -> (i32, i32, i32) {
    %c0_i32 = arith.constant 0 : i32
    %c0_i32_0 = arith.constant 0 : i32
    %c0_i32_1 = arith.constant 0 : i32
    return %arg2, %c0_i32, %c0_i32_0 : i32, i32, i32
  }
  func.func @transform_4(%arg0: i32, %arg1: i32, %arg2: i32) -> (i32, i32, i32) {
    %c0_i32 = arith.constant 0 : i32
    %c0_i32_0 = arith.constant 0 : i32
    %c0_i32_1 = arith.constant 0 : i32
    return %arg2, %c0_i32, %c0_i32_0 : i32, i32, i32
  }
  func.func @transform_5(%arg0: i32, %arg1: i32, %arg2: i32) -> (i32, i32, i32) {
    %c0_i32 = arith.constant 0 : i32
    %c0_i32_0 = arith.constant 0 : i32
    %c0_i32_1 = arith.constant 0 : i32
    return %arg2, %c0_i32, %c0_i32_0 : i32, i32, i32
  }
  func.func @transform_6(%arg0: i32, %arg1: i32, %arg2: i32) -> (i32, i32, i32, i32) {
    %c0_i32 = arith.constant 0 : i32
    %c0_i32_0 = arith.constant 0 : i32
    return %arg0, %arg2, %arg1, %c0_i32 : i32, i32, i32, i32
  }
}

</mosaic_0001>

<llo_original>
// kernel: tpu_custom_call.1
$region0: #{tpu_custom_call.1}
  #allocation0 [shape = 'u32[]', space=smem, size = 0x4, offset = 0x4, fixed_abs, tag = 'smem constant byte address 0x4 - core index']
  #allocation1 [shape = 'u32[72,128]{1,0:T(1,128)}', space=vmem, size = 0x9000, scoped, tag = 'internal scratch']
  %s0 = inlined_call_operand.vmem [shape: f32[2,8,32], index: 0, kind: input, shape index: {}]
  %s1 = inlined_call_operand.vmem [shape: f32[2,128,32], index: 1, kind: input, shape index: {}]
  %s2 = inlined_call_operand.vmem [shape: f32[1,32,32], index: 2, kind: input, shape index: {}]
  %s3 = inlined_call_operand.vmem [shape: f32[1,1,32], index: 3, kind: input, shape index: {}]
  %s4 = inlined_call_operand.vmem [shape: f32[1,32,32], index: 4, kind: input, shape index: {}]
  %s5 = inlined_call_operand.vmem [shape: f32[1,1,32], index: 5, kind: input, shape index: {}]
  %s6 = inlined_call_operand.hbm [shape: f32[2,4,8,128], index: 6, kind: output, shape index: {}]
  %s7 = sld [smem:[#allocation0]]
  $region34: #{tpu_custom_call.1} parent=0
    _
  %s9 = ssub.s32 1, %s7
  %s10 = scalar_select 0, %s9, %s7
  $region1: #{tpu_custom_call.1} parent=0
    #allocation2 [shape = 'u8[32768]{0}', space=vmem, size = 0x8000, scoped, tag = 'output window, operand 0, single buffered']
    #allocation3 [shape = 's32[1]{0}', space=sflag, size = 0x4, scoped, tag = 'scoped memory for tpu_custom_call.1']
    %11 = vsyncpa [#allocation3], 0
    // Predicated region
    $region2: #{tpu_custom_call.1} parent=1 // pred_check
      _
    $region3: #{tpu_custom_call.1} parent=1 // pred_check_branch
      %13 = sbr.rel (0) target = $region5
    $region4: #{tpu_custom_call.1} parent=1 // pred_region
      _
    $region5: #{tpu_custom_call.1} parent=1 // pred_fallthru
      _
    // Predicated region
    $region6: #{tpu_custom_call.1} parent=1 // pred_check
      _
    $region7: #{tpu_custom_call.1} parent=1 // pred_check_branch
      %15 = sbr.rel (0) target = $region9
    $region8: #{tpu_custom_call.1} parent=1 // pred_region
      _
    $region9: #{tpu_custom_call.1} parent=1 // pred_fallthru
      _
    // Predicated region
    $region10: #{tpu_custom_call.1} parent=1 // pred_check
      _
    $region11: #{tpu_custom_call.1} parent=1 // pred_check_branch
      %17 = sbr.rel (0) target = $region13
    $region12: #{tpu_custom_call.1} parent=1 // pred_region
      _
    $region13: #{tpu_custom_call.1} parent=1 // pred_fallthru
      _
    // Predicated region
    $region14: #{tpu_custom_call.1} parent=1 // pred_check
      _
    $region15: #{tpu_custom_call.1} parent=1 // pred_check_branch
      %19 = sbr.rel (0) target = $region17
    $region16: #{tpu_custom_call.1} parent=1 // pred_region
      _
    $region17: #{tpu_custom_call.1} parent=1 // pred_fallthru
      _
    // Predicated region
    $region18: #{tpu_custom_call.1} parent=1 // pred_check
      _
    $region19: #{tpu_custom_call.1} parent=1 // pred_check_branch
      %21 = sbr.rel (0) target = $region21
    $region20: #{tpu_custom_call.1} parent=1 // pred_region
      _
    $region21: #{tpu_custom_call.1} parent=1 // pred_fallthru
      _
    // Predicated region
    $region22: #{tpu_custom_call.1} parent=1 // pred_check
      _
    $region23: #{tpu_custom_call.1} parent=1 // pred_check_branch
      %23 = sbr.rel (0) target = $region25
    $region24: #{tpu_custom_call.1} parent=1 // pred_region
      _
    $region25: #{tpu_custom_call.1} parent=1 // pred_fallthru
      _
    %v24 = vld [vmem:[%s0] sm:$0xff]
    %v25 = vld [vmem:[%s0 + $0x8] sm:$0xff]
    %v26 = vld [vmem:[%s1] sm:$0xff]
    %v27 = vld [vmem:[%s1 + $0x8] sm:$0xff]
    %v28 = vld [vmem:[%s1 + $0x10] sm:$0xff]
    %v29 = vld [vmem:[%s1 + $0x18] sm:$0xff]
    %v30 = vld [vmem:[%s1 + $0x20] sm:$0xff]
    %v31 = vld [vmem:[%s1 + $0x28] sm:$0xff]
    %v32 = vld [vmem:[%s1 + $0x30] sm:$0xff]
    %v33 = vld [vmem:[%s1 + $0x38] sm:$0xff]
    %v34 = vld [vmem:[%s1 + $0x40] sm:$0xff]
    %v35 = vld [vmem:[%s1 + $0x48] sm:$0xff]
    %v36 = vld [vmem:[%s1 + $0x50] sm:$0xff]
    %v37 = vld [vmem:[%s1 + $0x58] sm:$0xff]
    %v38 = vld [vmem:[%s1 + $0x60] sm:$0xff]
    %v39 = vld [vmem:[%s1 + $0x68] sm:$0xff]
    %v40 = vld [vmem:[%s1 + $0x70] sm:$0xff]
    %v41 = vld [vmem:[%s1 + $0x78] sm:$0xff]
    %v42 = vld [vmem:[%s1 + $0x80] sm:$0xff]
    %v43 = vld [vmem:[%s1 + $0x88] sm:$0xff]
    %v44 = vld [vmem:[%s1 + $0x90] sm:$0xff]
    %v45 = vld [vmem:[%s1 + $0x98] sm:$0xff]
    %v46 = vld [vmem:[%s1 + $0xa0] sm:$0xff]
    %v47 = vld [vmem:[%s1 + $0xa8] sm:$0xff]
    %v48 = vld [vmem:[%s1 + $0xb0] sm:$0xff]
    %v49 = vld [vmem:[%s1 + $0xb8] sm:$0xff]
    %v50 = vld [vmem:[%s1 + $0xc0] sm:$0xff]
    %v51 = vld [vmem:[%s1 + $0xc8] sm:$0xff]
    %v52 = vld [vmem:[%s1 + $0xd0] sm:$0xff]
    %v53 = vld [vmem:[%s1 + $0xd8] sm:$0xff]
    %v54 = vld [vmem:[%s1 + $0xe0] sm:$0xff]
    %v55 = vld [vmem:[%s1 + $0xe8] sm:$0xff]
    %v56 = vld [vmem:[%s1 + $0xf0] sm:$0xff]
    %v57 = vld [vmem:[%s1 + $0xf8] sm:$0xff]
    %v58 = vld [vmem:[%s2] sm:$0xff]
    %v59 = vld [vmem:[%s2 + $0x8] sm:$0xff]
    %v60 = vld [vmem:[%s2 + $0x10] sm:$0xff]
    %v61 = vld [vmem:[%s2 + $0x18] sm:$0xff]
    %v62 = vld [vmem:[%s4] sm:$0xff]
    %v63 = vld [vmem:[%s4 + $0x8] sm:$0xff]
    %v64 = vld [vmem:[%s4 + $0x10] sm:$0xff]
    %v65 = vld [vmem:[%s4 + $0x18] sm:$0xff]
    %v66 = vld [vmem:[%s3] sm:$0x1]
    %v67 = vld [vmem:[%s5] sm:$0x1]
    %v69 = vperm.slane %v66, 0
    %vm71 = vcmask 261120
    %v73 = vsel %vm71, %v24, 0
    %v76 = vsel %vm71, %v25, 0
    %78 = vmatpush.msra.mxu0 0.0
    %79 = vmatpush.msra.mxu0 0.0
    %80 = vmatpush.msra.mxu0 0.0
    %81 = vmatpush.msra.mxu0 0.0
    %82 = vmatpush.msra.mxu0 0.0
    %83 = vmatpush.msra.mxu0 0.0
    %84 = vmatpush.msra.mxu0 0.0
    %85 = vmatpush.msra.mxu0 0.0
    %86 = vmatpush.msra.mxu0 0.0
    %87 = vmatpush.msra.mxu0 0.0
    %88 = vmatpush.msra.mxu0 0.0
    %89 = vmatpush.msra.mxu0 0.0
    %90 = vmatpush.msra.mxu0 %v61
    %91 = vmatpush.msra.mxu0 %v60
    %92 = vmatpush.msra.mxu0 %v59
    %93 = vmatpush.msra.mxu0 %v58
    %94 = vmatmul.f32.gmra.mxu0 %v73
    %v95 = vpop.f32.mrf.mxu0
    %v96 = vadd.f32 %v69, %v95
    %97 = vmatmul.f32.gmra.mxu0 %v76
    %v98 = vpop.f32.mrf.mxu0
    %v99 = vadd.f32 %v69, %v98
    %100 = vdwg.mxu0
    %v101 = vmul.f32 %v96, 0.35355338
    %v102 = vmul.f32 %v99, 0.35355338
    %v104 = vperm.slane %v67, 0
    %v107 = vsel %vm71, %v26, 0
    %v110 = vsel %vm71, %v27, 0
    %v113 = vsel %vm71, %v28, 0
    %v116 = vsel %vm71, %v29, 0
    %v119 = vsel %vm71, %v30, 0
    %v122 = vsel %vm71, %v31, 0
    %v125 = vsel %vm71, %v32, 0
    %v128 = vsel %vm71, %v33, 0
    %v131 = vsel %vm71, %v34, 0
    %v134 = vsel %vm71, %v35, 0
    %v137 = vsel %vm71, %v36, 0
    %v140 = vsel %vm71, %v37, 0
    %v143 = vsel %vm71, %v38, 0
    %v146 = vsel %vm71, %v39, 0
    %v149 = vsel %vm71, %v40, 0
    %v152 = vsel %vm71, %v41, 0
    %v155 = vsel %vm71, %v42, 0
    %v158 = vsel %vm71, %v43, 0
    %v161 = vsel %vm71, %v44, 0
    %v164 = vsel %vm71, %v45, 0
    %v167 = vsel %vm71, %v46, 0
    %v170 = vsel %vm71, %v47, 0
    %v173 = vsel %vm71, %v48, 0
    %v176 = vsel %vm71, %v49, 0
    %v179 = vsel %vm71, %v50, 0
    %v182 = vsel %vm71, %v51, 0
    %v185 = vsel %vm71, %v52, 0
    %v188 = vsel %vm71, %v53, 0
    %v191 = vsel %vm71, %v54, 0
    %v194 = vsel %vm71, %v55, 0
    %v197 = vsel %vm71, %v56, 0
    %v200 = vsel %vm71, %v57, 0
    %202 = vmatpush.msra.mxu0 0.0
    %203 = vmatpush.msra.mxu0 0.0
    %204 = vmatpush.msra.mxu0 0.0
    %205 = vmatpush.msra.mxu0 0.0
    %206 = vmatpush.msra.mxu0 0.0
    %207 = vmatpush.msra.mxu0 0.0
    %208 = vmatpush.msra.mxu0 0.0
    %209 = vmatpush.msra.mxu0 0.0
    %210 = vmatpush.msra.mxu0 0.0
    %211 = vmatpush.msra.mxu0 0.0
    %212 = vmatpush.msra.mxu0 0.0
    %213 = vmatpush.msra.mxu0 0.0
    %214 = vmatpush.msra.mxu0 %v65
    %215 = vmatpush.msra.mxu0 %v64
    %216 = vmatpush.msra.mxu0 %v63
    %217 = vmatpush.msra.mxu0 %v62
    %218 = vmatmul.f32.gmra.mxu0 %v107
    %v219 = vpop.f32.mrf.mxu0
    %v220 = vadd.f32 %v104, %v219
    %221 = vmatmul.f32.gmra.mxu0 %v110
    %v222 = vpop.f32.mrf.mxu0
    %v223 = vadd.f32 %v104, %v222
    %224 = vmatmul.f32.gmra.mxu0 %v113
    %v225 = vpop.f32.mrf.mxu0
    %v226 = vadd.f32 %v104, %v225
    %227 = vmatmul.f32.gmra.mxu0 %v116
    %v228 = vpop.f32.mrf.mxu0
    %v229 = vadd.f32 %v104, %v228
    %230 = vmatmul.f32.gmra.mxu0 %v119
    %v231 = vpop.f32.mrf.mxu0
    %v232 = vadd.f32 %v104, %v231
    %233 = vmatmul.f32.gmra.mxu0 %v122
    %v234 = vpop.f32.mrf.mxu0
    %v235 = vadd.f32 %v104, %v234
    %236 = vmatmul.f32.gmra.mxu0 %v125
    %v237 = vpop.f32.mrf.mxu0
    %v238 = vadd.f32 %v104, %v237
    %239 = vmatmul.f32.gmra.mxu0 %v128
    %v240 = vpop.f32.mrf.mxu0
    %v241 = vadd.f32 %v104, %v240
    %242 = vmatmul.f32.gmra.mxu0 %v131
    %v243 = vpop.f32.mrf.mxu0
    %v244 = vadd.f32 %v104, %v243
    %245 = vmatmul.f32.gmra.mxu0 %v134
    %v246 = vpop.f32.mrf.mxu0
    %v247 = vadd.f32 %v104, %v246
    %248 = vmatmul.f32.gmra.mxu0 %v137
    %v249 = vpop.f32.mrf.mxu0
    %v250 = vadd.f32 %v104, %v249
    %251 = vmatmul.f32.gmra.mxu0 %v140
    %v252 = vpop.f32.mrf.mxu0
    %v253 = vadd.f32 %v104, %v252
    %254 = vmatmul.f32.gmra.mxu0 %v143
    %v255 = vpop.f32.mrf.mxu0
    %v256 = vadd.f32 %v104, %v255
    %257 = vmatmul.f32.gmra.mxu0 %v146
    %v258 = vpop.f32.mrf.mxu0
    %v259 = vadd.f32 %v104, %v258
    %260 = vmatmul.f32.gmra.mxu0 %v149
    %v261 = vpop.f32.mrf.mxu0
    %v262 = vadd.f32 %v104, %v261
    %263 = vmatmul.f32.gmra.mxu0 %v152
    %v264 = vpop.f32.mrf.mxu0
    %v265 = vadd.f32 %v104, %v264
    %266 = vmatmul.f32.gmra.mxu0 %v155
    %v267 = vpop.f32.mrf.mxu0
    %v268 = vadd.f32 %v104, %v267
    %269 = vmatmul.f32.gmra.mxu0 %v158
    %v270 = vpop.f32.mrf.mxu0
    %v271 = vadd.f32 %v104, %v270
    %272 = vmatmul.f32.gmra.mxu0 %v161
    %v273 = vpop.f32.mrf.mxu0
    %v274 = vadd.f32 %v104, %v273
    %275 = vmatmul.f32.gmra.mxu0 %v164
    %v276 = vpop.f32.mrf.mxu0
    %v277 = vadd.f32 %v104, %v276
    %278 = vmatmul.f32.gmra.mxu0 %v167
    %v279 = vpop.f32.mrf.mxu0
    %v280 = vadd.f32 %v104, %v279
    %281 = vmatmul.f32.gmra.mxu0 %v170
    %v282 = vpop.f32.mrf.mxu0
    %v283 = vadd.f32 %v104, %v282
    %284 = vmatmul.f32.gmra.mxu0 %v173
    %v285 = vpop.f32.mrf.mxu0
    %v286 = vadd.f32 %v104, %v285
    %287 = vmatmul.f32.gmra.mxu0 %v176
    %v288 = vpop.f32.mrf.mxu0
    %v289 = vadd.f32 %v104, %v288
    %290 = vmatmul.f32.gmra.mxu0 %v179
    %v291 = vpop.f32.mrf.mxu0
    %v292 = vadd.f32 %v104, %v291
    %293 = vmatmul.f32.gmra.mxu0 %v182
    %v294 = vpop.f32.mrf.mxu0
    %v295 = vadd.f32 %v104, %v294
    %296 = vmatmul.f32.gmra.mxu0 %v185
    %v297 = vpop.f32.mrf.mxu0
    %v298 = vadd.f32 %v104, %v297
    %299 = vmatmul.f32.gmra.mxu0 %v188
    %v300 = vpop.f32.mrf.mxu0
    %v301 = vadd.f32 %v104, %v300
    %302 = vmatmul.f32.gmra.mxu0 %v191
    %v303 = vpop.f32.mrf.mxu0
    %v304 = vadd.f32 %v104, %v303
    %305 = vmatmul.f32.gmra.mxu0 %v194
    %v306 = vpop.f32.mrf.mxu0
    %v307 = vadd.f32 %v104, %v306
    %308 = vmatmul.f32.gmra.mxu0 %v197
    %v309 = vpop.f32.mrf.mxu0
    %v310 = vadd.f32 %v104, %v309
    %311 = vmatmul.f32.gmra.mxu0 %v200
    %v312 = vpop.f32.mrf.mxu0
    %v313 = vadd.f32 %v104, %v312
    %314 = vdwg.mxu0
    %v315 = vlaneseq
    %v316 = vand.u32 %v315, 127
    %vm317 = vcmp.lt.s32.totalorder %v316, 8
    %v318 = vsel %vm317, 0.0, -1e+09
    %vm319 = vcmask 64512
    %v321 = vsel %vm319, %v101, 0
    %v324 = vsel %vm319, %v220, 0
    %v327 = vsel %vm319, %v223, 0
    %v330 = vsel %vm319, %v226, 0
    %v333 = vsel %vm319, %v229, 0
    %v336 = vsel %vm319, %v232, 0
    %v339 = vsel %vm319, %v235, 0
    %v342 = vsel %vm319, %v238, 0
    %v345 = vsel %vm319, %v241, 0
    %v348 = vsel %vm319, %v244, 0
    %v351 = vsel %vm319, %v247, 0
    %v354 = vsel %vm319, %v250, 0
    %v357 = vsel %vm319, %v253, 0
    %v360 = vsel %vm319, %v256, 0
    %v363 = vsel %vm319, %v259, 0
    %v366 = vsel %vm319, %v262, 0
    %v369 = vsel %vm319, %v265, 0
    %371 = vmatpush.xpose.msra.mxu0 %v369
    %372 = vmatpush.xpose.msra.mxu0 %v366
    %373 = vmatpush.xpose.msra.mxu0 %v363
    %374 = vmatpush.xpose.msra.mxu0 %v360
    %375 = vmatpush.xpose.msra.mxu0 %v357
    %376 = vmatpush.xpose.msra.mxu0 %v354
    %377 = vmatpush.xpose.msra.mxu0 %v351
    %378 = vmatpush.xpose.msra.mxu0 %v348
    %379 = vmatpush.xpose.msra.mxu0 %v345
    %380 = vmatpush.xpose.msra.mxu0 %v342
    %381 = vmatpush.xpose.msra.mxu0 %v339
    %382 = vmatpush.xpose.msra.mxu0 %v336
    %383 = vmatpush.xpose.msra.mxu0 %v333
    %384 = vmatpush.xpose.msra.mxu0 %v330
    %385 = vmatpush.xpose.msra.mxu0 %v327
    %386 = vmatpush.xpose.msra.mxu0 %v324
    %387 = vmatmul.f32.gmra.mxu0 %v321
    %v388 = vpop.f32.mrf.mxu0
    %v389 = vadd.f32 %v318, %v388
    %390 = vdwg.mxu0
    %v392 = vsel %vm319, %v102, 0
    %v395 = vsel %vm319, %v268, 0
    %v398 = vsel %vm319, %v271, 0
    %v401 = vsel %vm319, %v274, 0
    %v404 = vsel %vm319, %v277, 0
    %v407 = vsel %vm319, %v280, 0
    %v410 = vsel %vm319, %v283, 0
    %v413 = vsel %vm319, %v286, 0
    %v416 = vsel %vm319, %v289, 0
    %v419 = vsel %vm319, %v292, 0
    %v422 = vsel %vm319, %v295, 0
    %v425 = vsel %vm319, %v298, 0
    %v428 = vsel %vm319, %v301, 0
    %v431 = vsel %vm319, %v304, 0
    %v434 = vsel %vm319, %v307, 0
    %v437 = vsel %vm319, %v310, 0
    %v440 = vsel %vm319, %v313, 0
    %442 = vmatpush.xpose.msra.mxu0 %v440
    %443 = vmatpush.xpose.msra.mxu0 %v437
    %444 = vmatpush.xpose.msra.mxu0 %v434
    %445 = vmatpush.xpose.msra.mxu0 %v431
    %446 = vmatpush.xpose.msra.mxu0 %v428
    %447 = vmatpush.xpose.msra.mxu0 %v425
    %448 = vmatpush.xpose.msra.mxu0 %v422
    %449 = vmatpush.xpose.msra.mxu0 %v419
    %450 = vmatpush.xpose.msra.mxu0 %v416
    %451 = vmatpush.xpose.msra.mxu0 %v413
    %452 = vmatpush.xpose.msra.mxu0 %v410
    %453 = vmatpush.xpose.msra.mxu0 %v407
    %454 = vmatpush.xpose.msra.mxu0 %v404
    %455 = vmatpush.xpose.msra.mxu0 %v401
    %456 = vmatpush.xpose.msra.mxu0 %v398
    %457 = vmatpush.xpose.msra.mxu0 %v395
    %458 = vmatmul.f32.gmra.mxu0 %v392
    %v459 = vpop.f32.mrf.mxu0
    %v460 = vadd.f32 %v318, %v459
    %461 = vdwg.mxu0
    %462 = vmax.xlane.f32.xlu0 %v389
    %v463 = vpop.xlane.xlu0 %462
    %464 = vmax.xlane.f32.xlu0 %v460
    %v465 = vpop.xlane.xlu0 %464
    %v466 = vsub.f32 %v389, %v463
    %v467 = vsub.f32 %v460, %v465
    %v468 = vmul.f32 %v466, 1.442695
    %v469 = vpow.pop %v468
    %v470 = vmul.f32 %v467, 1.442695
    %v471 = vpow.pop %v470
    %472 = vadd.xlane.f32.xlu0 %v469
    %v473 = vpop.xlane.xlu0 %472
    %474 = vadd.xlane.f32.xlu0 %v471
    %v475 = vpop.xlane.xlu0 %474
    %v476 = vrcp.pop %v473
    %v477 = vmul.f32 %v473, %v476
    %v478 = vsub.f32 1.0, %v477
    %v479 = vmul.f32 %v476, %v478
    %v480 = vadd.f32 %v476, %v479
    %vm481 = vweird.f32 %v473
    %vm482 = vweird.f32 %v476
    %vm483 = vmor %vm481, %vm482
    %v484 = vsel %vm483, %v476, %v480
    %v485 = vand.u32 2147483647, %v473
    %vm486 = vcmp.eq.f32.partialorder %v485, 8.507059e+37
    %v487 = vand.u32 %v473, 2147483648
    %v488 = vor.u32 1.1754944e-38, %v487
    %v489 = vsel %vm486, %v488, %v484
    %v490 = vrcp.pop %v475
    %v491 = vmul.f32 %v475, %v490
    %v492 = vsub.f32 1.0, %v491
    %v493 = vmul.f32 %v490, %v492
    %v494 = vadd.f32 %v490, %v493
    %vm495 = vweird.f32 %v475
    %vm496 = vweird.f32 %v490
    %vm497 = vmor %vm495, %vm496
    %v498 = vsel %vm497, %v490, %v494
    %v499 = vand.u32 2147483647, %v475
    %vm500 = vcmp.eq.f32.partialorder %v499, 8.507059e+37
    %v501 = vand.u32 %v475, 2147483648
    %v502 = vor.u32 1.1754944e-38, %v501
    %v503 = vsel %vm500, %v502, %v498
    %v504 = vmul.f32 %v469, %v489
    %v505 = vmul.f32 %v471, %v503
    %506 = vst [vmem:[#allocation2] sm:$0xff] %v504
    %507 = vst [vmem:[#allocation2 + $0x20] sm:$0xff] %v505
    %508 = vrot.lane.b32.xlu0 %v101, 120
    %v509 = vpop.permute.xlu0 %508
    %510 = vrot.lane.b32.xlu0 %v220, 120
    %v511 = vpop.permute.xlu0 %510
    %512 = vrot.lane.b32.xlu0 %v223, 120
    %v513 = vpop.permute.xlu0 %512
    %514 = vrot.lane.b32.xlu0 %v226, 120
    %v515 = vpop.permute.xlu0 %514
    %516 = vrot.lane.b32.xlu0 %v229, 120
    %v517 = vpop.permute.xlu0 %516
    %518 = vrot.lane.b32.xlu0 %v232, 120
    %v519 = vpop.permute.xlu0 %518
    %520 = vrot.lane.b32.xlu0 %v235, 120
    %v521 = vpop.permute.xlu0 %520
    %522 = vrot.lane.b32.xlu0 %v238, 120
    %v523 = vpop.permute.xlu0 %522
    %524 = vrot.lane.b32.xlu0 %v241, 120
    %v525 = vpop.permute.xlu0 %524
    %526 = vrot.lane.b32.xlu0 %v244, 120
    %v527 = vpop.permute.xlu0 %526
    %528 = vrot.lane.b32.xlu0 %v247, 120
    %v529 = vpop.permute.xlu0 %528
    %530 = vrot.lane.b32.xlu0 %v250, 120
    %v531 = vpop.permute.xlu0 %530
    %532 = vrot.lane.b32.xlu0 %v253, 120
    %v533 = vpop.permute.xlu0 %532
    %534 = vrot.lane.b32.xlu0 %v256, 120
    %v535 = vpop.permute.xlu0 %534
    %536 = vrot.lane.b32.xlu0 %v259, 120
    %v537 = vpop.permute.xlu0 %536
    %538 = vrot.lane.b32.xlu0 %v262, 120
    %v539 = vpop.permute.xlu0 %538
    %540 = vrot.lane.b32.xlu0 %v265, 120
    %v541 = vpop.permute.xlu0 %540
    %v542 = vsel %vm319, %v509, 0
    %v544 = vsel %vm319, %v511, 0
    %v546 = vsel %vm319, %v513, 0
    %v548 = vsel %vm319, %v515, 0
    %v550 = vsel %vm319, %v517, 0
    %v552 = vsel %vm319, %v519, 0
    %v554 = vsel %vm319, %v521, 0
    %v556 = vsel %vm319, %v523, 0
    %v558 = vsel %vm319, %v525, 0
    %v560 = vsel %vm319, %v527, 0
    %v562 = vsel %vm319, %v529, 0
    %v564 = vsel %vm319, %v531, 0
    %v566 = vsel %vm319, %v533, 0
    %v568 = vsel %vm319, %v535, 0
    %v570 = vsel %vm319, %v537, 0
    %v572 = vsel %vm319, %v539, 0
    %v574 = vsel %vm319, %v541, 0
    %576 = vmatpush.xpose.msra.mxu0 %v574
    %577 = vmatpush.xpose.msra.mxu0 %v572
    %578 = vmatpush.xpose.msra.mxu0 %v570
    %579 = vmatpush.xpose.msra.mxu0 %v568
    %580 = vmatpush.xpose.msra.mxu0 %v566
    %581 = vmatpush.xpose.msra.mxu0 %v564
    %582 = vmatpush.xpose.msra.mxu0 %v562
    %583 = vmatpush.xpose.msra.mxu0 %v560
    %584 = vmatpush.xpose.msra.mxu0 %v558
    %585 = vmatpush.xpose.msra.mxu0 %v556
    %586 = vmatpush.xpose.msra.mxu0 %v554
    %587 = vmatpush.xpose.msra.mxu0 %v552
    %588 = vmatpush.xpose.msra.mxu0 %v550
    %589 = vmatpush.xpose.msra.mxu0 %v548
    %590 = vmatpush.xpose.msra.mxu0 %v546
    %591 = vmatpush.xpose.msra.mxu0 %v544
    %592 = vmatmul.f32.gmra.mxu0 %v542
    %v593 = vpop.f32.mrf.mxu0
    %v594 = vadd.f32 %v318, %v593
    %595 = vdwg.mxu0
    %596 = vrot.lane.b32.xlu0 %v102, 120
    %v597 = vpop.permute.xlu0 %596
    %598 = vrot.lane.b32.xlu0 %v268, 120
    %v599 = vpop.permute.xlu0 %598
    %600 = vrot.lane.b32.xlu0 %v271, 120
    %v601 = vpop.permute.xlu0 %600
    %602 = vrot.lane.b32.xlu0 %v274, 120
    %v603 = vpop.permute.xlu0 %602
    %604 = vrot.lane.b32.xlu0 %v277, 120
    %v605 = vpop.permute.xlu0 %604
    %606 = vrot.lane.b32.xlu0 %v280, 120
    %v607 = vpop.permute.xlu0 %606
    %608 = vrot.lane.b32.xlu0 %v283, 120
    %v609 = vpop.permute.xlu0 %608
    %610 = vrot.lane.b32.xlu0 %v286, 120
    %v611 = vpop.permute.xlu0 %610
    %612 = vrot.lane.b32.xlu0 %v289, 120
    %v613 = vpop.permute.xlu0 %612
    %614 = vrot.lane.b32.xlu0 %v292, 120
    %v615 = vpop.permute.xlu0 %614
    %616 = vrot.lane.b32.xlu0 %v295, 120
    %v617 = vpop.permute.xlu0 %616
    %618 = vrot.lane.b32.xlu0 %v298, 120
    %v619 = vpop.permute.xlu0 %618
    %620 = vrot.lane.b32.xlu0 %v301, 120
    %v621 = vpop.permute.xlu0 %620
    %622 = vrot.lane.b32.xlu0 %v304, 120
    %v623 = vpop.permute.xlu0 %622
    %624 = vrot.lane.b32.xlu0 %v307, 120
    %v625 = vpop.permute.xlu0 %624
    %626 = vrot.lane.b32.xlu0 %v310, 120
    %v627 = vpop.permute.xlu0 %626
    %628 = vrot.lane.b32.xlu0 %v313, 120
    %v629 = vpop.permute.xlu0 %628
    %v630 = vsel %vm319, %v597, 0
    %v632 = vsel %vm319, %v599, 0
    %v634 = vsel %vm319, %v601, 0
    %v636 = vsel %vm319, %v603, 0
    %v638 = vsel %vm319, %v605, 0
    %v640 = vsel %vm319, %v607, 0
    %v642 = vsel %vm319, %v609, 0
    %v644 = vsel %vm319, %v611, 0
    %v646 = vsel %vm319, %v613, 0
    %v648 = vsel %vm319, %v615, 0
    %v650 = vsel %vm319, %v617, 0
    %v652 = vsel %vm319, %v619, 0
    %v654 = vsel %vm319, %v621, 0
    %v656 = vsel %vm319, %v623, 0
    %v658 = vsel %vm319, %v625, 0
    %v660 = vsel %vm319, %v627, 0
    %v662 = vsel %vm319, %v629, 0
    %664 = vmatpush.xpose.msra.mxu0 %v662
    %665 = vmatpush.xpose.msra.mxu0 %v660
    %666 = vmatpush.xpose.msra.mxu0 %v658
    %667 = vmatpush.xpose.msra.mxu0 %v656
    %668 = vmatpush.xpose.msra.mxu0 %v654
    %669 = vmatpush.xpose.msra.mxu0 %v652
    %670 = vmatpush.xpose.msra.mxu0 %v650
    %671 = vmatpush.xpose.msra.mxu0 %v648
    %672 = vmatpush.xpose.msra.mxu0 %v646
    %673 = vmatpush.xpose.msra.mxu0 %v644
    %674 = vmatpush.xpose.msra.mxu0 %v642
    %675 = vmatpush.xpose.msra.mxu0 %v640
    %676 = vmatpush.xpose.msra.mxu0 %v638
    %677 = vmatpush.xpose.msra.mxu0 %v636
    %678 = vmatpush.xpose.msra.mxu0 %v634
    %679 = vmatpush.xpose.msra.mxu0 %v632
    %680 = vmatmul.f32.gmra.mxu0 %v630
    %v681 = vpop.f32.mrf.mxu0
    %v682 = vadd.f32 %v318, %v681
    %683 = vdwg.mxu0
    %684 = vmax.xlane.f32.xlu0 %v594
    %v685 = vpop.xlane.xlu0 %684
    %686 = vmax.xlane.f32.xlu0 %v682
    %v687 = vpop.xlane.xlu0 %686
    %v688 = vsub.f32 %v594, %v685
    %v689 = vsub.f32 %v682, %v687
    %v690 = vmul.f32 %v688, 1.442695
    %v691 = vpow.pop %v690
    %v692 = vmul.f32 %v689, 1.442695
    %v693 = vpow.pop %v692
    %694 = vadd.xlane.f32.xlu0 %v691
    %v695 = vpop.xlane.xlu0 %694
    %696 = vadd.xlane.f32.xlu0 %v693
    %v697 = vpop.xlane.xlu0 %696
    %v698 = vrcp.pop %v695
    %v699 = vmul.f32 %v695, %v698
    %v700 = vsub.f32 1.0, %v699
    %v701 = vmul.f32 %v698, %v700
    %v702 = vadd.f32 %v698, %v701
    %vm703 = vweird.f32 %v695
    %vm704 = vweird.f32 %v698
    %vm705 = vmor %vm703, %vm704
    %v706 = vsel %vm705, %v698, %v702
    %v707 = vand.u32 2147483647, %v695
    %vm708 = vcmp.eq.f32.partialorder %v707, 8.507059e+37
    %v709 = vand.u32 %v695, 2147483648
    %v710 = vor.u32 1.1754944e-38, %v709
    %v711 = vsel %vm708, %v710, %v706
    %v712 = vrcp.pop %v697
    %v713 = vmul.f32 %v697, %v712
    %v714 = vsub.f32 1.0, %v713
    %v715 = vmul.f32 %v712, %v714
    %v716 = vadd.f32 %v712, %v715
    %vm717 = vweird.f32 %v697
    %vm718 = vweird.f32 %v712
    %vm719 = vmor %vm717, %vm718
    %v720 = vsel %vm719, %v712, %v716
    %v721 = vand.u32 2147483647, %v697
    %vm722 = vcmp.eq.f32.partialorder %v721, 8.507059e+37
    %v723 = vand.u32 %v697, 2147483648
    %v724 = vor.u32 1.1754944e-38, %v723
    %v725 = vsel %vm722, %v724, %v720
    %v726 = vmul.f32 %v691, %v711
    %v727 = vmul.f32 %v693, %v725
    %s728 = scalar_lea.vmem [#allocation2], 8
    %729 = vst [vmem:[%s728] sm:$0xff] %v726
    %730 = vst [vmem:[%s728 + $0x20] sm:$0xff] %v727
    %731 = vrot.lane.b32.xlu0 %v101, 112
    %v732 = vpop.permute.xlu0 %731
    %733 = vrot.lane.b32.xlu0 %v220, 112
    %v734 = vpop.permute.xlu0 %733
    %735 = vrot.lane.b32.xlu0 %v223, 112
    %v736 = vpop.permute.xlu0 %735
    %737 = vrot.lane.b32.xlu0 %v226, 112
    %v738 = vpop.permute.xlu0 %737
    %739 = vrot.lane.b32.xlu0 %v229, 112
    %v740 = vpop.permute.xlu0 %739
    %741 = vrot.lane.b32.xlu0 %v232, 112
    %v742 = vpop.permute.xlu0 %741
    %743 = vrot.lane.b32.xlu0 %v235, 112
    %v744 = vpop.permute.xlu0 %743
    %745 = vrot.lane.b32.xlu0 %v238, 112
    %v746 = vpop.permute.xlu0 %745
    %747 = vrot.lane.b32.xlu0 %v241, 112
    %v748 = vpop.permute.xlu0 %747
    %749 = vrot.lane.b32.xlu0 %v244, 112
    %v750 = vpop.permute.xlu0 %749
    %751 = vrot.lane.b32.xlu0 %v247, 112
    %v752 = vpop.permute.xlu0 %751
    %753 = vrot.lane.b32.xlu0 %v250, 112
    %v754 = vpop.permute.xlu0 %753
    %755 = vrot.lane.b32.xlu0 %v253, 112
    %v756 = vpop.permute.xlu0 %755
    %757 = vrot.lane.b32.xlu0 %v256, 112
    %v758 = vpop.permute.xlu0 %757
    %759 = vrot.lane.b32.xlu0 %v259, 112
    %v760 = vpop.permute.xlu0 %759
    %761 = vrot.lane.b32.xlu0 %v262, 112
    %v762 = vpop.permute.xlu0 %761
    %763 = vrot.lane.b32.xlu0 %v265, 112
    %v764 = vpop.permute.xlu0 %763
    %v765 = vsel %vm319, %v732, 0
    %v767 = vsel %vm319, %v734, 0
    %v769 = vsel %vm319, %v736, 0
    %v771 = vsel %vm319, %v738, 0
    %v773 = vsel %vm319, %v740, 0
    %v775 = vsel %vm319, %v742, 0
    %v777 = vsel %vm319, %v744, 0
    %v779 = vsel %vm319, %v746, 0
    %v781 = vsel %vm319, %v748, 0
    %v783 = vsel %vm319, %v750, 0
    %v785 = vsel %vm319, %v752, 0
    %v787 = vsel %vm319, %v754, 0
    %v789 = vsel %vm319, %v756, 0
    %v791 = vsel %vm319, %v758, 0
    %v793 = vsel %vm319, %v760, 0
    %v795 = vsel %vm319, %v762, 0
    %v797 = vsel %vm319, %v764, 0
    %799 = vmatpush.xpose.msra.mxu0 %v797
    %800 = vmatpush.xpose.msra.mxu0 %v795
    %801 = vmatpush.xpose.msra.mxu0 %v793
    %802 = vmatpush.xpose.msra.mxu0 %v791
    %803 = vmatpush.xpose.msra.mxu0 %v789
    %804 = vmatpush.xpose.msra.mxu0 %v787
    %805 = vmatpush.xpose.msra.mxu0 %v785
    %806 = vmatpush.xpose.msra.mxu0 %v783
    %807 = vmatpush.xpose.msra.mxu0 %v781
    %808 = vmatpush.xpose.msra.mxu0 %v779
    %809 = vmatpush.xpose.msra.mxu0 %v777
    %810 = vmatpush.xpose.msra.mxu0 %v775
    %811 = vmatpush.xpose.msra.mxu0 %v773
    %812 = vmatpush.xpose.msra.mxu0 %v771
    %813 = vmatpush.xpose.msra.mxu0 %v769
    %814 = vmatpush.xpose.msra.mxu0 %v767
    %815 = vmatmul.f32.gmra.mxu0 %v765
    %v816 = vpop.f32.mrf.mxu0
    %v817 = vadd.f32 %v318, %v816
    %818 = vdwg.mxu0
    %819 = vrot.lane.b32.xlu0 %v102, 112
    %v820 = vpop.permute.xlu0 %819
    %821 = vrot.lane.b32.xlu0 %v268, 112
    %v822 = vpop.permute.xlu0 %821
    %823 = vrot.lane.b32.xlu0 %v271, 112
    %v824 = vpop.permute.xlu0 %823
    %825 = vrot.lane.b32.xlu0 %v274, 112
    %v826 = vpop.permute.xlu0 %825
    %827 = vrot.lane.b32.xlu0 %v277, 112
    %v828 = vpop.permute.xlu0 %827
    %829 = vrot.lane.b32.xlu0 %v280, 112
    %v830 = vpop.permute.xlu0 %829
    %831 = vrot.lane.b32.xlu0 %v283, 112
    %v832 = vpop.permute.xlu0 %831
    %833 = vrot.lane.b32.xlu0 %v286, 112
    %v834 = vpop.permute.xlu0 %833
    %835 = vrot.lane.b32.xlu0 %v289, 112
    %v836 = vpop.permute.xlu0 %835
    %837 = vrot.lane.b32.xlu0 %v292, 112
    %v838 = vpop.permute.xlu0 %837
    %839 = vrot.lane.b32.xlu0 %v295, 112
    %v840 = vpop.permute.xlu0 %839
    %841 = vrot.lane.b32.xlu0 %v298, 112
    %v842 = vpop.permute.xlu0 %841
    %843 = vrot.lane.b32.xlu0 %v301, 112
    %v844 = vpop.permute.xlu0 %843
    %845 = vrot.lane.b32.xlu0 %v304, 112
    %v846 = vpop.permute.xlu0 %845
    %847 = vrot.lane.b32.xlu0 %v307, 112
    %v848 = vpop.permute.xlu0 %847
    %849 = vrot.lane.b32.xlu0 %v310, 112
    %v850 = vpop.permute.xlu0 %849
    %851 = vrot.lane.b32.xlu0 %v313, 112
    %v852 = vpop.permute.xlu0 %851
    %v853 = vsel %vm319, %v820, 0
    %v855 = vsel %vm319, %v822, 0
    %v857 = vsel %vm319, %v824, 0
    %v859 = vsel %vm319, %v826, 0
    %v861 = vsel %vm319, %v828, 0
    %v863 = vsel %vm319, %v830, 0
    %v865 = vsel %vm319, %v832, 0
    %v867 = vsel %vm319, %v834, 0
    %v869 = vsel %vm319, %v836, 0
    %v871 = vsel %vm319, %v838, 0
    %v873 = vsel %vm319, %v840, 0
    %v875 = vsel %vm319, %v842, 0
    %v877 = vsel %vm319, %v844, 0
    %v879 = vsel %vm319, %v846, 0
    %v881 = vsel %vm319, %v848, 0
    %v883 = vsel %vm319, %v850, 0
    %v885 = vsel %vm319, %v852, 0
    %887 = vmatpush.xpose.msra.mxu0 %v885
    %888 = vmatpush.xpose.msra.mxu0 %v883
    %889 = vmatpush.xpose.msra.mxu0 %v881
    %890 = vmatpush.xpose.msra.mxu0 %v879
    %891 = vmatpush.xpose.msra.mxu0 %v877
    %892 = vmatpush.xpose.msra.mxu0 %v875
    %893 = vmatpush.xpose.msra.mxu0 %v873
    %894 = vmatpush.xpose.msra.mxu0 %v871
    %895 = vmatpush.xpose.msra.mxu0 %v869
    %896 = vmatpush.xpose.msra.mxu0 %v867
    %897 = vmatpush.xpose.msra.mxu0 %v865
    %898 = vmatpush.xpose.msra.mxu0 %v863
    %899 = vmatpush.xpose.msra.mxu0 %v861
    %900 = vmatpush.xpose.msra.mxu0 %v859
    %901 = vmatpush.xpose.msra.mxu0 %v857
    %902 = vmatpush.xpose.msra.mxu0 %v855
    %903 = vmatmul.f32.gmra.mxu0 %v853
    %v904 = vpop.f32.mrf.mxu0
    %v905 = vadd.f32 %v318, %v904
    %906 = vdwg.mxu0
    %907 = vmax.xlane.f32.xlu0 %v817
    %v908 = vpop.xlane.xlu0 %907
    %909 = vmax.xlane.f32.xlu0 %v905
    %v910 = vpop.xlane.xlu0 %909
    %v911 = vsub.f32 %v817, %v908
    %v912 = vsub.f32 %v905, %v910
    %v913 = vmul.f32 %v911, 1.442695
    %v914 = vpow.pop %v913
    %v915 = vmul.f32 %v912, 1.442695
    %v916 = vpow.pop %v915
    %917 = vadd.xlane.f32.xlu0 %v914
    %v918 = vpop.xlane.xlu0 %917
    %919 = vadd.xlane.f32.xlu0 %v916
    %v920 = vpop.xlane.xlu0 %919
    %v921 = vrcp.pop %v918
    %v922 = vmul.f32 %v918, %v921
    %v923 = vsub.f32 1.0, %v922
    %v924 = vmul.f32 %v921, %v923
    %v925 = vadd.f32 %v921, %v924
    %vm926 = vweird.f32 %v918
    %vm927 = vweird.f32 %v921
    %vm928 = vmor %vm926, %vm927
    %v929 = vsel %vm928, %v921, %v925
    %v930 = vand.u32 2147483647, %v918
    %vm931 = vcmp.eq.f32.partialorder %v930, 8.507059e+37
    %v932 = vand.u32 %v918, 2147483648
    %v933 = vor.u32 1.1754944e-38, %v932
    %v934 = vsel %vm931, %v933, %v929
    %v935 = vrcp.pop %v920
    %v936 = vmul.f32 %v920, %v935
    %v937 = vsub.f32 1.0, %v936
    %v938 = vmul.f32 %v935, %v937
    %v939 = vadd.f32 %v935, %v938
    %vm940 = vweird.f32 %v920
    %vm941 = vweird.f32 %v935
    %vm942 = vmor %vm940, %vm941
    %v943 = vsel %vm942, %v935, %v939
    %v944 = vand.u32 2147483647, %v920
    %vm945 = vcmp.eq.f32.partialorder %v944, 8.507059e+37
    %v946 = vand.u32 %v920, 2147483648
    %v947 = vor.u32 1.1754944e-38, %v946
    %v948 = vsel %vm945, %v947, %v943
    %v949 = vmul.f32 %v914, %v934
    %v950 = vmul.f32 %v916, %v948
    %s951 = scalar_lea.vmem [#allocation2], 16
    %952 = vst [vmem:[%s951] sm:$0xff] %v949
    %953 = vst [vmem:[%s951 + $0x20] sm:$0xff] %v950
    %954 = vrot.lane.b32.xlu0 %v101, 104
    %v955 = vpop.permute.xlu0 %954
    %956 = vrot.lane.b32.xlu0 %v220, 104
    %v957 = vpop.permute.xlu0 %956
    %958 = vrot.lane.b32.xlu0 %v223, 104
    %v959 = vpop.permute.xlu0 %958
    %960 = vrot.lane.b32.xlu0 %v226, 104
    %v961 = vpop.permute.xlu0 %960
    %962 = vrot.lane.b32.xlu0 %v229, 104
    %v963 = vpop.permute.xlu0 %962
    %964 = vrot.lane.b32.xlu0 %v232, 104
    %v965 = vpop.permute.xlu0 %964
    %966 = vrot.lane.b32.xlu0 %v235, 104
    %v967 = vpop.permute.xlu0 %966
    %968 = vrot.lane.b32.xlu0 %v238, 104
    %v969 = vpop.permute.xlu0 %968
    %970 = vrot.lane.b32.xlu0 %v241, 104
    %v971 = vpop.permute.xlu0 %970
    %972 = vrot.lane.b32.xlu0 %v244, 104
    %v973 = vpop.permute.xlu0 %972
    %974 = vrot.lane.b32.xlu0 %v247, 104
    %v975 = vpop.permute.xlu0 %974
    %976 = vrot.lane.b32.xlu0 %v250, 104
    %v977 = vpop.permute.xlu0 %976
    %978 = vrot.lane.b32.xlu0 %v253, 104
    %v979 = vpop.permute.xlu0 %978
    %980 = vrot.lane.b32.xlu0 %v256, 104
    %v981 = vpop.permute.xlu0 %980
    %982 = vrot.lane.b32.xlu0 %v259, 104
    %v983 = vpop.permute.xlu0 %982
    %984 = vrot.lane.b32.xlu0 %v262, 104
    %v985 = vpop.permute.xlu0 %984
    %986 = vrot.lane.b32.xlu0 %v265, 104
    %v987 = vpop.permute.xlu0 %986
    %v988 = vsel %vm319, %v955, 0
    %v990 = vsel %vm319, %v957, 0
    %v992 = vsel %vm319, %v959, 0
    %v994 = vsel %vm319, %v961, 0
    %v996 = vsel %vm319, %v963, 0
    %v998 = vsel %vm319, %v965, 0
    %v1000 = vsel %vm319, %v967, 0
    %v1002 = vsel %vm319, %v969, 0
    %v1004 = vsel %vm319, %v971, 0
    %v1006 = vsel %vm319, %v973, 0
    %v1008 = vsel %vm319, %v975, 0
    %v1010 = vsel %vm319, %v977, 0
    %v1012 = vsel %vm319, %v979, 0
    %v1014 = vsel %vm319, %v981, 0
    %v1016 = vsel %vm319, %v983, 0
    %v1018 = vsel %vm319, %v985, 0
    %v1020 = vsel %vm319, %v987, 0
    %1022 = vmatpush.xpose.msra.mxu0 %v1020
    %1023 = vmatpush.xpose.msra.mxu0 %v1018
    %1024 = vmatpush.xpose.msra.mxu0 %v1016
    %1025 = vmatpush.xpose.msra.mxu0 %v1014
    %1026 = vmatpush.xpose.msra.mxu0 %v1012
    %1027 = vmatpush.xpose.msra.mxu0 %v1010
    %1028 = vmatpush.xpose.msra.mxu0 %v1008
    %1029 = vmatpush.xpose.msra.mxu0 %v1006
    %1030 = vmatpush.xpose.msra.mxu0 %v1004
    %1031 = vmatpush.xpose.msra.mxu0 %v1002
    %1032 = vmatpush.xpose.msra.mxu0 %v1000
    %1033 = vmatpush.xpose.msra.mxu0 %v998
    %1034 = vmatpush.xpose.msra.mxu0 %v996
    %1035 = vmatpush.xpose.msra.mxu0 %v994
    %1036 = vmatpush.xpose.msra.mxu0 %v992
    %1037 = vmatpush.xpose.msra.mxu0 %v990
    %1038 = vmatmul.f32.gmra.mxu0 %v988
    %v1039 = vpop.f32.mrf.mxu0
    %v1040 = vadd.f32 %v318, %v1039
    %1041 = vdwg.mxu0
    %1042 = vrot.lane.b32.xlu0 %v102, 104
    %v1043 = vpop.permute.xlu0 %1042
    %1044 = vrot.lane.b32.xlu0 %v268, 104
    %v1045 = vpop.permute.xlu0 %1044
    %1046 = vrot.lane.b32.xlu0 %v271, 104
    %v1047 = vpop.permute.xlu0 %1046
    %1048 = vrot.lane.b32.xlu0 %v274, 104
    %v1049 = vpop.permute.xlu0 %1048
    %1050 = vrot.lane.b32.xlu0 %v277, 104
    %v1051 = vpop.permute.xlu0 %1050
    %1052 = vrot.lane.b32.xlu0 %v280, 104
    %v1053 = vpop.permute.xlu0 %1052
    %1054 = vrot.lane.b32.xlu0 %v283, 104
    %v1055 = vpop.permute.xlu0 %1054
    %1056 = vrot.lane.b32.xlu0 %v286, 104
    %v1057 = vpop.permute.xlu0 %1056
    %1058 = vrot.lane.b32.xlu0 %v289, 104
    %v1059 = vpop.permute.xlu0 %1058
    %1060 = vrot.lane.b32.xlu0 %v292, 104
    %v1061 = vpop.permute.xlu0 %1060
    %1062 = vrot.lane.b32.xlu0 %v295, 104
    %v1063 = vpop.permute.xlu0 %1062
    %1064 = vrot.lane.b32.xlu0 %v298, 104
    %v1065 = vpop.permute.xlu0 %1064
    %1066 = vrot.lane.b32.xlu0 %v301, 104
    %v1067 = vpop.permute.xlu0 %1066
    %1068 = vrot.lane.b32.xlu0 %v304, 104
    %v1069 = vpop.permute.xlu0 %1068
    %1070 = vrot.lane.b32.xlu0 %v307, 104
    %v1071 = vpop.permute.xlu0 %1070
    %1072 = vrot.lane.b32.xlu0 %v310, 104
    %v1073 = vpop.permute.xlu0 %1072
    %1074 = vrot.lane.b32.xlu0 %v313, 104
    %v1075 = vpop.permute.xlu0 %1074
    %v1076 = vsel %vm319, %v1043, 0
    %v1078 = vsel %vm319, %v1045, 0
    %v1080 = vsel %vm319, %v1047, 0
    %v1082 = vsel %vm319, %v1049, 0
    %v1084 = vsel %vm319, %v1051, 0
    %v1086 = vsel %vm319, %v1053, 0
    %v1088 = vsel %vm319, %v1055, 0
    %v1090 = vsel %vm319, %v1057, 0
    %v1092 = vsel %vm319, %v1059, 0
    %v1094 = vsel %vm319, %v1061, 0
    %v1096 = vsel %vm319, %v1063, 0
    %v1098 = vsel %vm319, %v1065, 0
    %v1100 = vsel %vm319, %v1067, 0
    %v1102 = vsel %vm319, %v1069, 0
    %v1104 = vsel %vm319, %v1071, 0
    %v1106 = vsel %vm319, %v1073, 0
    %v1108 = vsel %vm319, %v1075, 0
    %1110 = vmatpush.xpose.msra.mxu0 %v1108
    %1111 = vmatpush.xpose.msra.mxu0 %v1106
    %1112 = vmatpush.xpose.msra.mxu0 %v1104
    %1113 = vmatpush.xpose.msra.mxu0 %v1102
    %1114 = vmatpush.xpose.msra.mxu0 %v1100
    %1115 = vmatpush.xpose.msra.mxu0 %v1098
    %1116 = vmatpush.xpose.msra.mxu0 %v1096
    %1117 = vmatpush.xpose.msra.mxu0 %v1094
    %1118 = vmatpush.xpose.msra.mxu0 %v1092
    %1119 = vmatpush.xpose.msra.mxu0 %v1090
    %1120 = vmatpush.xpose.msra.mxu0 %v1088
    %1121 = vmatpush.xpose.msra.mxu0 %v1086
    %1122 = vmatpush.xpose.msra.mxu0 %v1084
    %1123 = vmatpush.xpose.msra.mxu0 %v1082
    %1124 = vmatpush.xpose.msra.mxu0 %v1080
    %1125 = vmatpush.xpose.msra.mxu0 %v1078
    %1126 = vmatmul.f32.gmra.mxu0 %v1076
    %v1127 = vpop.f32.mrf.mxu0
    %v1128 = vadd.f32 %v318, %v1127
    %1129 = vdwg.mxu0
    %1130 = vmax.xlane.f32.xlu0 %v1040
    %v1131 = vpop.xlane.xlu0 %1130
    %1132 = vmax.xlane.f32.xlu0 %v1128
    %v1133 = vpop.xlane.xlu0 %1132
    %v1134 = vsub.f32 %v1040, %v1131
    %v1135 = vsub.f32 %v1128, %v1133
    %v1136 = vmul.f32 %v1134, 1.442695
    %v1137 = vpow.pop %v1136
    %v1138 = vmul.f32 %v1135, 1.442695
    %v1139 = vpow.pop %v1138
    %1140 = vadd.xlane.f32.xlu0 %v1137
    %v1141 = vpop.xlane.xlu0 %1140
    %1142 = vadd.xlane.f32.xlu0 %v1139
    %v1143 = vpop.xlane.xlu0 %1142
    %v1144 = vrcp.pop %v1141
    %v1145 = vmul.f32 %v1141, %v1144
    %v1146 = vsub.f32 1.0, %v1145
    %v1147 = vmul.f32 %v1144, %v1146
    %v1148 = vadd.f32 %v1144, %v1147
    %vm1149 = vweird.f32 %v1141
    %vm1150 = vweird.f32 %v1144
    %vm1151 = vmor %vm1149, %vm1150
    %v1152 = vsel %vm1151, %v1144, %v1148
    %v1153 = vand.u32 2147483647, %v1141
    %vm1154 = vcmp.eq.f32.partialorder %v1153, 8.507059e+37
    %v1155 = vand.u32 %v1141, 2147483648
    %v1156 = vor.u32 1.1754944e-38, %v1155
    %v1157 = vsel %vm1154, %v1156, %v1152
    %v1158 = vrcp.pop %v1143
    %v1159 = vmul.f32 %v1143, %v1158
    %v1160 = vsub.f32 1.0, %v1159
    %v1161 = vmul.f32 %v1158, %v1160
    %v1162 = vadd.f32 %v1158, %v1161
    %vm1163 = vweird.f32 %v1143
    %vm1164 = vweird.f32 %v1158
    %vm1165 = vmor %vm1163, %vm1164
    %v1166 = vsel %vm1165, %v1158, %v1162
    %v1167 = vand.u32 2147483647, %v1143
    %vm1168 = vcmp.eq.f32.partialorder %v1167, 8.507059e+37
    %v1169 = vand.u32 %v1143, 2147483648
    %v1170 = vor.u32 1.1754944e-38, %v1169
    %v1171 = vsel %vm1168, %v1170, %v1166
    %v1172 = vmul.f32 %v1137, %v1157
    %v1173 = vmul.f32 %v1139, %v1171
    %s1174 = scalar_lea.vmem [#allocation2], 24
    %1175 = vst [vmem:[%s1174] sm:$0xff] %v1172
    %1176 = vst [vmem:[%s1174 + $0x20] sm:$0xff] %v1173
    // Predicated region
    $region26: #{tpu_custom_call.1} parent=1 // pred_check
      _
    $region27: #{tpu_custom_call.1} parent=1 // pred_check_branch
      %1178 = sbr.rel (0) target = $region29
    $region28: #{tpu_custom_call.1} parent=1 // pred_region
      %1180 = vsyncadd [#allocation3], 0
      %s1181 = sshll.u32 [#allocation2], 4
      %s1182 = int_to_ptr.vmem [resolvable:$true] %s1181
      %s1183 = sshll.u32 %s6, 4
      %s1184 = int_to_ptr.hbm [resolvable:$true] %s1183
      %1189 = dma.vmem_to_hbm [thread:$0]  %s1182, 1024, %s1184, [#allocation3], 128, 128, 8
    $region29: #{tpu_custom_call.1} parent=1 // pred_fallthru
      _
    // Predicated region
    $region30: #{tpu_custom_call.1} parent=1 // pred_check
      _
    $region31: #{tpu_custom_call.1} parent=1 // pred_check_branch
      %1191 = sbr.rel (0) target = $region33
    $region32: #{tpu_custom_call.1} parent=1 // pred_region
      %1193 = dma.done [#allocation3], 1024
    $region33: #{tpu_custom_call.1} parent=1 // pred_fallthru
      _
    %1194 = vsyncpa [#allocation3], 1

</llo_original>
